<compile_context>
chip_gen: v5e
topology: v5e:2x2
jax: 0.10.0
libtpu: 0.0.40
codegen_flags: <defaults>
</compile_context>

<pallas_src>
import jax
import jax.numpy as jnp
from jax.experimental import pallas as pl
from jax.experimental.pallas import tpu as pltpu


def _make_scconv_kernel(hop, alpha, cache_s, bn_eps=1e-5):
    """SCConv kernel for one (phase, node-tile) grid step.

    phase 0: per N-tile compute S, cache it, accumulate h_c = S^T @ X; on the
             last tile run BatchNorm + the GCN hops once (writes `hlat`).
    phase 1: per N-tile read S back and write out = S @ hlat.
    """

    def kernel(x_ref, wc_ref, bc_ref, *rest):
        gcn_w = rest[:hop]                 # hop x (f_in_i, f_out)       bf16
        gcn_b = rest[hop:2 * hop]          # hop x (1, f_out)            f32
        out_ref = rest[2 * hop]            # (B, TILE_N, f_out)          bf16
        hc_acc = rest[2 * hop + 1]         # VMEM scratch (B, L, f_in)   f32
        hlat = rest[2 * hop + 2]           # VMEM scratch (B, L, f_out)  bf16
        s_cache = rest[2 * hop + 3] if cache_s else None  # (nt,B,tn,L)  bf16

        phase = pl.program_id(0)           # 0: pool + BN + GCN, 1: un-pool
        tile = pl.program_id(1)
        last_tile = pl.num_programs(1) - 1

        bsz, tn, f_in = x_ref.shape
        lat = wc_ref.shape[1]

        def classify_softmax():
            # classifier + softmax (bf16 MXU operands, f32 math)
            x = x_ref[...]                                  # (B, tn, f_in) bf16
            logits = (jnp.dot(x.reshape(bsz * tn, f_in), wc_ref[...],
                              preferred_element_type=jnp.float32)
                      + bc_ref[...]).reshape(bsz, tn, lat)
            logits = logits - jnp.max(logits, axis=-1, keepdims=True)
            num = jnp.exp(logits)
            denom = jnp.sum(num, axis=-1, keepdims=True)
            s = num * pl.reciprocal(denom)                  # exact recip on EUP
            return s.astype(jnp.bfloat16)                   # (B, tn, L)

        # --- phase 0, first tile: zero the pooled accumulator ---------------
        @pl.when(jnp.logical_and(phase == 0, tile == 0))
        def _init():
            hc_acc[...] = jnp.zeros_like(hc_acc)

        # --- phase 0: accumulate soft pooling h_c = S^T @ X ------------------
        @pl.when(phase == 0)
        def _pool():
            s_bf = classify_softmax()
            if cache_s:
                s_cache[tile] = s_bf
            hc_acc[...] += jnp.einsum('bnl,bnf->blf', s_bf, x_ref[...],
                                      preferred_element_type=jnp.float32)

        # --- end of phase 0: BatchNorm (training-mode stats) + GCN hops ------
        # TODO(synk): if L*f grows, hoist into its own tiny pallas_call so it
        #             does not stall the pipeline at the phase boundary.
        @pl.when(jnp.logical_and(phase == 0, tile == last_tile))
        def _bn_gcn():
            h_c = hc_acc[...]                               # (B, L, f_in) f32
            cnt = float(h_c.shape[0] * h_c.shape[2])
            mean = jnp.sum(jnp.sum(h_c, axis=2, keepdims=True),
                           axis=0, keepdims=True) / cnt
            diff = h_c - mean
            var = jnp.sum(jnp.sum(diff * diff, axis=2, keepdims=True),
                          axis=0, keepdims=True) / cnt
            h = (diff * jax.lax.rsqrt(var + bn_eps)).reshape(
                h_c.shape[0] * h_c.shape[1], h_c.shape[2])
            for i in range(hop):
                z = (jnp.dot(h.astype(jnp.bfloat16), gcn_w[i][...],
                             preferred_element_type=jnp.float32)
                     + gcn_b[i][...])
                h = jnp.maximum(z, alpha * z)               # LeakyReLU
            hlat[...] = h.reshape(hlat.shape).astype(jnp.bfloat16)

        # --- phase 1: un-pool this node tile: out = S @ h_latent -------------
        @pl.when(phase == 1)
        def _unpool():
            s_bf = s_cache[tile] if cache_s else classify_softmax()
            out_ref[...] = jnp.einsum(
                'bnl,blo->bno', s_bf, hlat[...],
                preferred_element_type=jnp.float32).astype(out_ref.dtype)

    return kernel


# ------------------------------ tiling plan ---------------------------------

_VMEM_BUDGET = 40 << 20      # compute-plan budget; fits v7x's 64 MiB VMEM
_VMEM_LIMIT_CAP = 48 << 20   # never ask the compiler for more than this
_MAX_TILE = 4096


def _vmem_padded_bytes(shape, itemsize):
    """Approximate VMEM footprint: last dim padded to 128 lanes, second-to-last
    padded to the dtype's sublane packing (8 for 4B, 16 for 2B, 32 for 1B)."""
    if not shape:
        return itemsize
    s = list(shape)
    sub = 8 * (4 // itemsize) if itemsize in (1, 2, 4) else 8
    s[-1] = -(-s[-1] // 128) * 128
    if len(s) >= 2:
        s[-2] = -(-s[-2] // sub) * sub
    total = 1
    for d in s:
        total *= d
    return total * itemsize


def _plan_tiling(B, N, f_in, f_out, lat, out_itemsize):
    """Pick (node_tile, cache_s, vmem_limit_bytes) under a v7x-safe budget."""
    fixed = (_vmem_padded_bytes((B, lat, f_in), 4)        # hc_acc (f32)
             + _vmem_padded_bytes((B, lat, f_out), 2))    # hlat   (bf16)

    def step_bytes(tn):
        # double-buffered x tile + double-buffered output tile (weights are
        # tiny whole-array blocks; the +8 MiB margin below covers them).
        return (2 * _vmem_padded_bytes((B, tn, f_in), 2)
                + 2 * _vmem_padded_bytes((B, tn, f_out), out_itemsize))

    # Candidate tiles: divisors of N that keep the sublane dim a multiple of 8,
    # plus the whole axis for small N; largest first, capped at _MAX_TILE.
    cands = [t for t in range(8, min(N, _MAX_TILE) + 1, 8) if N % t == 0]
    if N <= _MAX_TILE:
        cands.append(N)
    cands = sorted(set(cands), reverse=True) or [N]

    def limit(need):
        return int(min(_VMEM_LIMIT_CAP, max(need + (8 << 20), 24 << 20)))

    for cache_s in (True, False):
        for tn in cands:
            nt = -(-N // tn)
            s_bytes = _vmem_padded_bytes((nt * B, tn, lat), 2) if cache_s else 0
            need = fixed + s_bytes + step_bytes(tn)
            if need <= _VMEM_BUDGET:
                return tn, cache_s, limit(need)
    tn = cands[-1]                                   # smallest candidate
    return tn, False, limit(fixed + step_bytes(tn))


# ------------------------------- wrapper -------------------------------------

def scconv_forward(x, adj, params, alpha, out_dtype=jnp.bfloat16):
    """SCConv forward.  `adj` is accepted for interface parity with the PyTorch
    module but the output never depends on it (the pooled adjacency is dead
    code in the reference), so it is not passed to the kernel at all."""
    del adj
    wc, bc = params['wc'], params['bc']
    gcn_ws, gcn_bs = params['gcn_ws'], params['gcn_bs']
    hop = len(gcn_ws)
    B, N, f_in = x.shape
    lat = wc.shape[1]
    f_out = gcn_ws[-1].shape[1]

    out_itemsize = jnp.dtype(out_dtype).itemsize
    tn, cache_s, vmem_limit = _plan_tiling(B, N, f_in, f_out, lat, out_itemsize)
    nt = -(-N // tn)

    # bf16 for anything that only feeds the MXU; f32 for elementwise math.
    x_bf = x.astype(jnp.bfloat16)
    wc_bf = wc.astype(jnp.bfloat16)
    ws_bf = [w.astype(jnp.bfloat16) for w in gcn_ws]
    bc_f = bc.astype(jnp.float32)
    bs_f = [b.astype(jnp.float32) for b in gcn_bs]

    def _whole(arr):
        nd = arr.ndim
        return pl.BlockSpec(arr.shape, lambda p, t, _nd=nd: (0,) * _nd)

    if cache_s:
        # x is only needed in phase 0; pin its block index during phase 1 so
        # the pipeliner issues no new x DMAs for the un-pool pass.
        x_map = lambda p, t: (0, t * (1 - p), 0)
    else:
        x_map = lambda p, t: (0, t, 0)

    # Output block index only advances in phase 1: never flush unwritten VMEM.
    out_map = lambda p, t: (0, t * p, 0)

    scratch = [
        pltpu.VMEM((B, lat, f_in), jnp.float32),     # h_c accumulator
        pltpu.VMEM((B, lat, f_out), jnp.bfloat16),   # post-BN/GCN latent
    ]
    if cache_s:
        scratch.append(pltpu.VMEM((nt, B, tn, lat), jnp.bfloat16))  # S cache

    grid_spec = pltpu.PrefetchScalarGridSpec(
        num_scalar_prefetch=0,
        grid=(2, nt),                                   # (phase, node-tile)
        in_specs=[
            pl.BlockSpec((B, tn, f_in), x_map),         # x tile
            _whole(wc_bf),
            _whole(bc_f),
            *[_whole(w) for w in ws_bf],
            *[_whole(b) for b in bs_f],
        ],
        out_specs=pl.BlockSpec((B, tn, f_out), out_map),
        scratch_shapes=scratch,
    )

    return pl.pallas_call(
        _make_scconv_kernel(hop, alpha, cache_s),
        out_shape=jax.ShapeDtypeStruct((B, N, f_out), out_dtype),
        grid_spec=grid_spec,
        compiler_params=pltpu.CompilerParams(
            # Both axes must stay sequential on one core: the node-tile axis
            # carries the h_c reduction in phase 0, and phase 1 consumes the
            # hlat / S-cache written in phase 0.
            dimension_semantics=("arbitrary", "arbitrary"),
            vmem_limit_bytes=int(vmem_limit),
        ),
    )(x_bf, wc_bf, bc_f, *ws_bf, *bs_f)


def scconv_ref(x, adj, params, alpha):
    """Pure-JAX f32 reference (dropout = identity; adj pooling is dead code)."""
    del adj
    S = jax.nn.softmax(x @ params['wc'] + params['bc'], axis=-1)
    h_c = jnp.einsum('bnl,bnf->blf', S, x)
    mean = jnp.mean(h_c, axis=(0, 2), keepdims=True)
    var = jnp.mean((h_c - mean) ** 2, axis=(0, 2), keepdims=True)
    h = (h_c - mean) / jnp.sqrt(var + 1e-5)
    for w, b in zip(params['gcn_ws'], params['gcn_bs']):
        h = h @ w + b
        h = jnp.where(h >= 0, h, alpha * h)
    return jnp.einsum('bnl,blo->bno', S, h)


if __name__ == "__main__":
    B, N = 2, 16
    IN_FEATURES, OUT_FEATURES = 32, 32
    LATENT_NUM, GCN_HOP = 8, 2
    ALPHA = 0.2  # LeakyReLU negative slope

    key = jax.random.PRNGKey(0)
    keys = jax.random.split(key, 6)

    x = jax.random.normal(keys[0], (B, N, IN_FEATURES), jnp.float32)
    adj = (jax.random.uniform(keys[1], (B, N, N)) > 0.5).astype(jnp.float32)

    # Deterministic synthetic parameter init (module __init__ gives shapes only).
    wc = jax.random.normal(keys[2], (IN_FEATURES, LATENT_NUM), jnp.float32) / jnp.sqrt(IN_FEATURES)
    bc = jax.random.normal(keys[3], (1, LATENT_NUM), jnp.float32) * 0.1
    gcn_ws, gcn_bs = [], []
    for i in range(GCN_HOP):
        fi = IN_FEATURES if i == 0 else OUT_FEATURES
        gcn_ws.append(jax.random.normal(jax.random.fold_in(keys[4], i),
                                        (fi, OUT_FEATURES), jnp.float32) / jnp.sqrt(fi))
        gcn_bs.append(jax.random.normal(jax.random.fold_in(keys[5], i),
                                        (1, OUT_FEATURES), jnp.float32) * 0.1)
    params = dict(wc=wc, bc=bc, gcn_ws=gcn_ws, gcn_bs=gcn_bs)

    out = scconv_forward(x, adj, params, ALPHA)
    jax.block_until_ready(out)

    ref = scconv_ref(x, adj, params, ALPHA)
    assert out.shape == (B, N, OUT_FEATURES)
    # Kernel uses bf16 MXU operands (f32 accumulation) and a bf16 output ->
    # compare against the f32 reference at bf16-level tolerance.
    out_f32 = out.astype(jnp.float32)
    err = float(jnp.max(jnp.abs(out_f32 - ref)))
    assert jnp.allclose(out_f32, ref, rtol=5e-2, atol=5e-2), f"max abs err {err}"

    print("KERNEL_OK")
</pallas_src>

<mosaic_0001>
module attributes {stable_mosaic.version = 11 : i64} {
  func.func @kernel(%arg0: i32, %arg1: i32, %arg2: memref<2x16x32xbf16, #tpu.memory_space<vmem>>, %arg3: memref<32x8xbf16, #tpu.memory_space<vmem>>, %arg4: memref<1x8xf32, #tpu.memory_space<vmem>>, %arg5: memref<32x32xbf16, #tpu.memory_space<vmem>>, %arg6: memref<32x32xbf16, #tpu.memory_space<vmem>>, %arg7: memref<1x32xf32, #tpu.memory_space<vmem>>, %arg8: memref<1x32xf32, #tpu.memory_space<vmem>>, %arg9: memref<2x16x32xbf16, #tpu.memory_space<vmem>>, %arg10: memref<2x8x32xf32, #tpu.memory_space<vmem>>, %arg11: memref<2x8x32xbf16, #tpu.memory_space<vmem>>, %arg12: memref<1x2x16x8xbf16, #tpu.memory_space<vmem>>) attributes {dimension_semantics = [#tpu.dimension_semantics<arbitrary>, #tpu.dimension_semantics<arbitrary>], iteration_bounds = array<i64: 2, 1>, scalar_prefetch = 0 : i64, scratch_operands = 3 : i64, tpu.core_type = #tpu.core_type<tc>, window_params = [{transform_indices = @transform_0, window_bounds = array<i64: 2, 16, 32>}, {pipeline_mode = #tpu.pipeline_mode<synchronous>, transform_indices = @transform_1, window_bounds = array<i64: 32, 8>}, {pipeline_mode = #tpu.pipeline_mode<synchronous>, transform_indices = @transform_2, window_bounds = array<i64: 1, 8>}, {pipeline_mode = #tpu.pipeline_mode<synchronous>, transform_indices = @transform_3, window_bounds = array<i64: 32, 32>}, {pipeline_mode = #tpu.pipeline_mode<synchronous>, transform_indices = @transform_4, window_bounds = array<i64: 32, 32>}, {pipeline_mode = #tpu.pipeline_mode<synchronous>, transform_indices = @transform_5, window_bounds = array<i64: 1, 32>}, {pipeline_mode = #tpu.pipeline_mode<synchronous>, transform_indices = @transform_6, window_bounds = array<i64: 1, 32>}, {transform_indices = @transform_7, window_bounds = array<i64: 2, 16, 32>}]} {
    %c0_i32 = arith.constant 0 : i32
    %0 = arith.cmpi eq, %arg0, %c0_i32 : i32
    %c0_i32_0 = arith.constant 0 : i32
    %1 = arith.cmpi eq, %arg1, %c0_i32_0 : i32
    %2 = arith.andi %0, %1 : i1
    %3 = arith.extui %2 : i1 to i32
    %c0_i32_1 = arith.constant 0 : i32
    %4 = arith.cmpi ne, %3, %c0_i32_1 : i32
    scf.if %4 {
      %cst = arith.constant 0.000000e+00 : f32
      %16 = vector.broadcast %cst : f32 to vector<2x8x32xf32>
      %c0 = arith.constant 0 : index
      %c0_8 = arith.constant 0 : index
      %c0_9 = arith.constant 0 : index
      %17 = vector.load %arg10[%c0, %c0_8, %c0_9] : memref<2x8x32xf32, #tpu.memory_space<vmem>>, vector<2x8x32xf32>
      tpu.vector_store %arg10[%c0, %c0_8, %c0_9], %16 {strides = array<i32>} : memref<2x8x32xf32, #tpu.memory_space<vmem>>, vector<2x8x32xf32>,
    } else {
    }
    %c0_i32_2 = arith.constant 0 : i32
    %5 = arith.cmpi eq, %arg0, %c0_i32_2 : i32
    %6 = arith.extui %5 : i1 to i32
    %c0_i32_3 = arith.constant 0 : i32
    %7 = arith.cmpi ne, %6, %c0_i32_3 : i32
    scf.if %7 {
      %c0 = arith.constant 0 : index
      %c0_8 = arith.constant 0 : index
      %c0_9 = arith.constant 0 : index
      %16 = vector.load %arg2[%c0, %c0_8, %c0_9] : memref<2x16x32xbf16, #tpu.memory_space<vmem>>, vector<2x16x32xbf16>
      %17 = vector.shape_cast %16 : vector<2x16x32xbf16> to vector<32x32xbf16>
      %c0_10 = arith.constant 0 : index
      %c0_11 = arith.constant 0 : index
      %18 = vector.load %arg3[%c0_10, %c0_11] : memref<32x8xbf16, #tpu.memory_space<vmem>>, vector<32x8xbf16>
      %cst = arith.constant dense<0.000000e+00> : vector<32x8xf32>
      %19 = tpu.matmul %17, %18, %cst {dimension_numbers = #tpu.dot_dimension_numbers<[1], [0], [0], [1], [0, 0, 1, 1], [], []>} : vector<32x32xbf16>, vector<32x8xbf16>, vector<32x8xf32> -> vector<32x8xf32>
      %c0_12 = arith.constant 0 : index
      %c0_13 = arith.constant 0 : index
      %20 = vector.load %arg4[%c0_12, %c0_13] : memref<1x8xf32, #tpu.memory_space<vmem>>, vector<1x8xf32>
      %21 = vector.broadcast %20 : vector<1x8xf32> to vector<32x8xf32>
      %22 = arith.addf %19, %21 : vector<32x8xf32>
      %23 = vector.shape_cast %22 : vector<32x8xf32> to vector<2x16x8xf32>
      %cst_14 = arith.constant dense<0xFF800000> : vector<2x16xf32>
      %24 = vector.multi_reduction <maximumf>, %23, %cst_14 [2] : vector<2x16x8xf32> to vector<2x16xf32>
      %25 = vector.shape_cast %24 : vector<2x16xf32> to vector<2x16x1xf32>
      %26 = vector.broadcast %25 : vector<2x16x1xf32> to vector<2x16x8xf32>
      %27 = arith.subf %23, %26 : vector<2x16x8xf32>
      %28 = math.exp %27 : vector<2x16x8xf32>
      %cst_15 = arith.constant dense<0.000000e+00> : vector<2x16xf32>
      %29 = vector.multi_reduction <add>, %28, %cst_15 [2] : vector<2x16x8xf32> to vector<2x16xf32>
      %30 = vector.shape_cast %29 : vector<2x16xf32> to vector<2x16x1xf32>
      %31 = tpu.reciprocal %30 : vector<2x16x1xf32> -> vector<2x16x1xf32>
      %32 = vector.broadcast %31 : vector<2x16x1xf32> to vector<2x16x8xf32>
      %33 = arith.mulf %28, %32 : vector<2x16x8xf32>
      %34 = arith.truncf %33 : vector<2x16x8xf32> to vector<2x16x8xbf16>
      %35 = arith.index_cast %arg1 : i32 to index
      %c0_16 = arith.constant 0 : index
      %c0_17 = arith.constant 0 : index
      %c0_18 = arith.constant 0 : index
      %36 = vector.load %arg12[%35, %c0_16, %c0_17, %c0_18] : memref<1x2x16x8xbf16, #tpu.memory_space<vmem>>, vector<1x2x16x8xbf16>
      %37 = vector.shape_cast %36 : vector<1x2x16x8xbf16> to vector<2x16x8xbf16>
      %38 = vector.shape_cast %34 : vector<2x16x8xbf16> to vector<1x2x16x8xbf16>
      tpu.vector_store %arg12[%35, %c0_16, %c0_17, %c0_18], %38 {strides = array<i32>} : memref<1x2x16x8xbf16, #tpu.memory_space<vmem>>, vector<1x2x16x8xbf16>,
      %c0_19 = arith.constant 0 : index
      %c0_20 = arith.constant 0 : index
      %c0_21 = arith.constant 0 : index
      %39 = vector.load %arg10[%c0_19, %c0_20, %c0_21] : memref<2x8x32xf32, #tpu.memory_space<vmem>>, vector<2x8x32xf32>
      %c0_22 = arith.constant 0 : index
      %c0_23 = arith.constant 0 : index
      %c0_24 = arith.constant 0 : index
      %40 = vector.load %arg2[%c0_22, %c0_23, %c0_24] : memref<2x16x32xbf16, #tpu.memory_space<vmem>>, vector<2x16x32xbf16>
      "tpu.trace_start"() <{level = 10 : i32, message = "bnl,bnf->blf"}> : () -> ()
      %cst_25 = arith.constant dense<0.000000e+00> : vector<2x8x32xf32>
      %41 = tpu.matmul %34, %40, %cst_25 {dimension_numbers = #tpu.dot_dimension_numbers<[1], [1], [2], [2], [0, 0, 0, 2, 1, 2], [0], [0]>} : vector<2x16x8xbf16>, vector<2x16x32xbf16>, vector<2x8x32xf32> -> vector<2x8x32xf32>
      "tpu.trace_stop"() : () -> ()
      %42 = arith.addf %39, %41 : vector<2x8x32xf32>
      %c0_26 = arith.constant 0 : index
      %c0_27 = arith.constant 0 : index
      %c0_28 = arith.constant 0 : index
      %43 = vector.load %arg10[%c0_26, %c0_27, %c0_28] : memref<2x8x32xf32, #tpu.memory_space<vmem>>, vector<2x8x32xf32>
      tpu.vector_store %arg10[%c0_26, %c0_27, %c0_28], %42 {strides = array<i32>} : memref<2x8x32xf32, #tpu.memory_space<vmem>>, vector<2x8x32xf32>,
    } else {
    }
    %c0_i32_4 = arith.constant 0 : i32
    %8 = arith.cmpi eq, %arg0, %c0_i32_4 : i32
    %c0_i32_5 = arith.constant 0 : i32
    %9 = arith.cmpi eq, %arg1, %c0_i32_5 : i32
    %10 = arith.andi %8, %9 : i1
    %11 = arith.extui %10 : i1 to i32
    %c0_i32_6 = arith.constant 0 : i32
    %12 = arith.cmpi ne, %11, %c0_i32_6 : i32
    scf.if %12 {
      %c0 = arith.constant 0 : index
      %c0_8 = arith.constant 0 : index
      %c0_9 = arith.constant 0 : index
      %16 = vector.load %arg10[%c0, %c0_8, %c0_9] : memref<2x8x32xf32, #tpu.memory_space<vmem>>, vector<2x8x32xf32>
      %cst = arith.constant dense<0.000000e+00> : vector<2x8xf32>
      %17 = vector.multi_reduction <add>, %16, %cst [2] : vector<2x8x32xf32> to vector<2x8xf32>
      %18 = vector.shape_cast %17 : vector<2x8xf32> to vector<2x8x1xf32>
      %cst_10 = arith.constant dense<0.000000e+00> : vector<8x1xf32>
      %19 = vector.multi_reduction <add>, %18, %cst_10 [0] : vector<2x8x1xf32> to vector<8x1xf32>
      %20 = vector.shape_cast %19 : vector<8x1xf32> to vector<1x8x1xf32>
      %cst_11 = arith.constant 6.400000e+01 : f32
      %21 = vector.broadcast %cst_11 : f32 to vector<1x8x1xf32>
      %22 = arith.divf %20, %21 : vector<1x8x1xf32>
      %23 = vector.broadcast %22 : vector<1x8x1xf32> to vector<2x8x32xf32>
      %24 = arith.subf %16, %23 : vector<2x8x32xf32>
      %25 = arith.mulf %24, %24 : vector<2x8x32xf32>
      %cst_12 = arith.constant dense<0.000000e+00> : vector<2x8xf32>
      %26 = vector.multi_reduction <add>, %25, %cst_12 [2] : vector<2x8x32xf32> to vector<2x8xf32>
      %27 = vector.shape_cast %26 : vector<2x8xf32> to vector<2x8x1xf32>
      %cst_13 = arith.constant dense<0.000000e+00> : vector<8x1xf32>
      %28 = vector.multi_reduction <add>, %27, %cst_13 [0] : vector<2x8x1xf32> to vector<8x1xf32>
      %29 = vector.shape_cast %28 : vector<8x1xf32> to vector<1x8x1xf32>
      %cst_14 = arith.constant 6.400000e+01 : f32
      %30 = vector.broadcast %cst_14 : f32 to vector<1x8x1xf32>
      %31 = arith.divf %29, %30 : vector<1x8x1xf32>
      %cst_15 = arith.constant 9.99999974E-6 : f32
      %32 = vector.broadcast %cst_15 : f32 to vector<1x8x1xf32>
      %33 = arith.addf %31, %32 : vector<1x8x1xf32>
      %34 = math.rsqrt %33 : vector<1x8x1xf32>
      %35 = vector.broadcast %34 : vector<1x8x1xf32> to vector<2x8x32xf32>
      %36 = arith.mulf %24, %35 : vector<2x8x32xf32>
      %37 = vector.shape_cast %36 : vector<2x8x32xf32> to vector<16x32xf32>
      %38 = arith.truncf %37 : vector<16x32xf32> to vector<16x32xbf16>
      %c0_16 = arith.constant 0 : index
      %c0_17 = arith.constant 0 : index
      %39 = vector.load %arg5[%c0_16, %c0_17] : memref<32x32xbf16, #tpu.memory_space<vmem>>, vector<32x32xbf16>
      %cst_18 = arith.constant dense<0.000000e+00> : vector<16x32xf32>
      %40 = tpu.matmul %38, %39, %cst_18 {dimension_numbers = #tpu.dot_dimension_numbers<[1], [0], [0], [1], [0, 0, 1, 1], [], []>} : vector<16x32xbf16>, vector<32x32xbf16>, vector<16x32xf32> -> vector<16x32xf32>
      %c0_19 = arith.constant 0 : index
      %c0_20 = arith.constant 0 : index
      %41 = vector.load %arg7[%c0_19, %c0_20] : memref<1x32xf32, #tpu.memory_space<vmem>>, vector<1x32xf32>
      %42 = vector.broadcast %41 : vector<1x32xf32> to vector<16x32xf32>
      %43 = arith.addf %40, %42 : vector<16x32xf32>
      %cst_21 = arith.constant 2.000000e-01 : f32
      %44 = vector.broadcast %cst_21 : f32 to vector<16x32xf32>
      %45 = arith.mulf %44, %43 : vector<16x32xf32>
      %46 = arith.maximumf %43, %45 : vector<16x32xf32>
      %47 = arith.truncf %46 : vector<16x32xf32> to vector<16x32xbf16>
      %c0_22 = arith.constant 0 : index
      %c0_23 = arith.constant 0 : index
      %48 = vector.load %arg6[%c0_22, %c0_23] : memref<32x32xbf16, #tpu.memory_space<vmem>>, vector<32x32xbf16>
      %cst_24 = arith.constant dense<0.000000e+00> : vector<16x32xf32>
      %49 = tpu.matmul %47, %48, %cst_24 {dimension_numbers = #tpu.dot_dimension_numbers<[1], [0], [0], [1], [0, 0, 1, 1], [], []>} : vector<16x32xbf16>, vector<32x32xbf16>, vector<16x32xf32> -> vector<16x32xf32>
      %c0_25 = arith.constant 0 : index
      %c0_26 = arith.constant 0 : index
      %50 = vector.load %arg8[%c0_25, %c0_26] : memref<1x32xf32, #tpu.memory_space<vmem>>, vector<1x32xf32>
      %51 = vector.broadcast %50 : vector<1x32xf32> to vector<16x32xf32>
      %52 = arith.addf %49, %51 : vector<16x32xf32>
      %cst_27 = arith.constant 2.000000e-01 : f32
      %53 = vector.broadcast %cst_27 : f32 to vector<16x32xf32>
      %54 = arith.mulf %53, %52 : vector<16x32xf32>
      %55 = arith.maximumf %52, %54 : vector<16x32xf32>
      %56 = vector.shape_cast %55 : vector<16x32xf32> to vector<2x8x32xf32>
      %57 = arith.truncf %56 : vector<2x8x32xf32> to vector<2x8x32xbf16>
      %c0_28 = arith.constant 0 : index
      %c0_29 = arith.constant 0 : index
      %c0_30 = arith.constant 0 : index
      %58 = vector.load %arg11[%c0_28, %c0_29, %c0_30] : memref<2x8x32xbf16, #tpu.memory_space<vmem>>, vector<2x8x32xbf16>
      tpu.vector_store %arg11[%c0_28, %c0_29, %c0_30], %57 {strides = array<i32>} : memref<2x8x32xbf16, #tpu.memory_space<vmem>>, vector<2x8x32xbf16>,
    } else {
    }
    %c1_i32 = arith.constant 1 : i32
    %13 = arith.cmpi eq, %arg0, %c1_i32 : i32
    %14 = arith.extui %13 : i1 to i32
    %c0_i32_7 = arith.constant 0 : i32
    %15 = arith.cmpi ne, %14, %c0_i32_7 : i32
    scf.if %15 {
      %16 = arith.index_cast %arg1 : i32 to index
      %c0 = arith.constant 0 : index
      %c0_8 = arith.constant 0 : index
      %c0_9 = arith.constant 0 : index
      %17 = vector.load %arg12[%16, %c0, %c0_8, %c0_9] : memref<1x2x16x8xbf16, #tpu.memory_space<vmem>>, vector<1x2x16x8xbf16>
      %18 = vector.shape_cast %17 : vector<1x2x16x8xbf16> to vector<2x16x8xbf16>
      %c0_10 = arith.constant 0 : index
      %c0_11 = arith.constant 0 : index
      %c0_12 = arith.constant 0 : index
      %19 = vector.load %arg11[%c0_10, %c0_11, %c0_12] : memref<2x8x32xbf16, #tpu.memory_space<vmem>>, vector<2x8x32xbf16>
      "tpu.trace_start"() <{level = 10 : i32, message = "bnl,blo->bno"}> : () -> ()
      %cst = arith.constant dense<0.000000e+00> : vector<2x16x32xf32>
      %20 = tpu.matmul %18, %19, %cst {dimension_numbers = #tpu.dot_dimension_numbers<[2], [1], [1], [2], [0, 0, 0, 1, 1, 2], [0], [0]>} : vector<2x16x8xbf16>, vector<2x8x32xbf16>, vector<2x16x32xf32> -> vector<2x16x32xf32>
      "tpu.trace_stop"() : () -> ()
      %21 = arith.truncf %20 : vector<2x16x32xf32> to vector<2x16x32xbf16>
      %c0_13 = arith.constant 0 : index
      %c0_14 = arith.constant 0 : index
      %c0_15 = arith.constant 0 : index
      %22 = vector.load %arg9[%c0_13, %c0_14, %c0_15] : memref<2x16x32xbf16, #tpu.memory_space<vmem>>, vector<2x16x32xbf16>
      tpu.vector_store %arg9[%c0_13, %c0_14, %c0_15], %21 {strides = array<i32>} : memref<2x16x32xbf16, #tpu.memory_space<vmem>>, vector<2x16x32xbf16>,
    } else {
    }
    return
  }
  func.func @transform_0(%arg0: i32, %arg1: i32) -> (i32, i32, i32) {
    %c1_i32 = arith.constant 1 : i32
    %0 = arith.subi %c1_i32, %arg0 : i32
    %1 = arith.muli %arg1, %0 : i32
    %c0_i32 = arith.constant 0 : i32
    %c0_i32_0 = arith.constant 0 : i32
    %c0_i32_1 = arith.constant 0 : i32
    return %c0_i32, %1, %c0_i32_0 : i32, i32, i32
  }
  func.func @transform_1(%arg0: i32, %arg1: i32) -> (i32, i32) {
    %c0_i32 = arith.constant 0 : i32
    %c0_i32_0 = arith.constant 0 : i32
    %c0_i32_1 = arith.constant 0 : i32
    return %c0_i32, %c0_i32_0 : i32, i32
  }
  func.func @transform_2(%arg0: i32, %arg1: i32) -> (i32, i32) {
    %c0_i32 = arith.constant 0 : i32
    %c0_i32_0 = arith.constant 0 : i32
    %c0_i32_1 = arith.constant 0 : i32
    return %c0_i32, %c0_i32_0 : i32, i32
  }
  func.func @transform_3(%arg0: i32, %arg1: i32) -> (i32, i32) {
    %c0_i32 = arith.constant 0 : i32
    %c0_i32_0 = arith.constant 0 : i32
    %c0_i32_1 = arith.constant 0 : i32
    return %c0_i32, %c0_i32_0 : i32, i32
  }
  func.func @transform_4(%arg0: i32, %arg1: i32) -> (i32, i32) {
    %c0_i32 = arith.constant 0 : i32
    %c0_i32_0 = arith.constant 0 : i32
    %c0_i32_1 = arith.constant 0 : i32
    return %c0_i32, %c0_i32_0 : i32, i32
  }
  func.func @transform_5(%arg0: i32, %arg1: i32) -> (i32, i32) {
    %c0_i32 = arith.constant 0 : i32
    %c0_i32_0 = arith.constant 0 : i32
    %c0_i32_1 = arith.constant 0 : i32
    return %c0_i32, %c0_i32_0 : i32, i32
  }
  func.func @transform_6(%arg0: i32, %arg1: i32) -> (i32, i32) {
    %c0_i32 = arith.constant 0 : i32
    %c0_i32_0 = arith.constant 0 : i32
    %c0_i32_1 = arith.constant 0 : i32
    return %c0_i32, %c0_i32_0 : i32, i32
  }
  func.func @transform_7(%arg0: i32, %arg1: i32) -> (i32, i32, i32) {
    %0 = arith.muli %arg1, %arg0 : i32
    %c0_i32 = arith.constant 0 : i32
    %c0_i32_0 = arith.constant 0 : i32
    %c0_i32_1 = arith.constant 0 : i32
    return %c0_i32, %0, %c0_i32_0 : i32, i32, i32
  }
}

</mosaic_0001>

<llo_original>
// kernel: tpu_custom_call.1
$region0: #{tpu_custom_call.1}
  #allocation0 [shape = 'u32[]', space=smem, size = 0x4, offset = 0x4, fixed_abs, tag = 'smem constant byte address 0x4 - core index']
  #allocation1 [shape = 'u32[72,128]{1,0:T(1,128)}', space=vmem, size = 0x9000, scoped, tag = 'internal scratch']
  #allocation2 [shape = 'f32[2,8,32]{2,1,0:T(8,128)}', space=vmem, size = 0x2000, scoped, tag = 'scratch operand']
  #allocation3 [shape = 'bf16[2,8,32]{2,1,0:T(8,128)(2,1)}', space=vmem, size = 0x1000, scoped, tag = 'scratch operand']
  #allocation4 [shape = 'bf16[1,2,16,8]{3,2,1,0:T(8,128)(2,1)}', space=vmem, size = 0x2000, scoped, tag = 'scratch operand']
  %s0 = inlined_call_operand.vmem [shape: bf16[2,16,32], index: 0, kind: input, shape index: {}]
  %s1 = inlined_call_operand.vmem [shape: bf16[32,8], index: 1, kind: input, shape index: {}]
  %s2 = inlined_call_operand.vmem [shape: f32[1,8], index: 2, kind: input, shape index: {}]
  %s3 = inlined_call_operand.hbm [shape: bf16[32,32], index: 3, kind: input, shape index: {}]
  %s4 = inlined_call_operand.hbm [shape: bf16[32,32], index: 4, kind: input, shape index: {}]
  %s5 = inlined_call_operand.vmem [shape: f32[1,32], index: 5, kind: input, shape index: {}]
  %s6 = inlined_call_operand.vmem [shape: f32[1,32], index: 6, kind: input, shape index: {}]
  %s7 = inlined_call_operand.hbm [shape: bf16[2,16,32], index: 7, kind: output, shape index: {}]
  %s8 = sld [smem:[#allocation0]]
  $region85: #{tpu_custom_call.1} parent=0
    _
  %s10 = ssub.s32 1, %s8
  %s11 = scalar_select 0, %s10, %s8
  $region1: #{tpu_custom_call.1} parent=0
    #allocation5 [shape = 'u8[8192]{0}', space=vmem, size = 0x2000, scoped, tag = 'input window, operand 3, single buffered']
    #allocation6 [shape = 's32[2]{0}', space=sflag, size = 0x8, scoped, tag = 'scoped memory for tpu_custom_call.1']
    #allocation7 [shape = 's32[2]{0}', space=sflag, size = 0x8, scoped, tag = 'scoped memory for tpu_custom_call.1']
    #allocation8 [shape = 'u8[8192]{0}', space=vmem, size = 0x2000, scoped, tag = 'input window, operand 4, single buffered']
    #allocation9 [shape = 's32[1]{0}', space=sflag, size = 0x4, scoped, tag = 'scoped memory for tpu_custom_call.1']
    #allocation10 [shape = 'u8[16384]{0}', space=vmem, size = 0x4000, scoped, tag = 'output window, operand 0']
    %12 = vsyncpa [#allocation6], 0
    %13 = vsyncpa [#allocation9], 0
    %14 = vsyncpa [#allocation7], 0
    %s15 = scalar_lea.sflag [#allocation7], 1
    %16 = vsyncpa %s15, 0
    loop: start=0, step=1, limit=4
    $region2: #{tpu_custom_call.1} parent=1 // loop_pre_header
      _
    $region3: #{tpu_custom_call.1} parent=1 // loop_header
      %s18 = sphi 0, %s22
      %p19 = scmp.ge.s32.totalorder %s18, 4
      %s25 = sphi 0, %s37
      %s26 = sphi 0, %s33
      %s27 = sphi 0, %s25
      %s28 = sphi 0, %s26
      %s29 = sphi 0, %s27
      %s30 = sphi 0, %s28
      %s44 = sphi 0, %s46
      %s47 = sphi 0, %s44
      %s48 = sphi 0, %s47
      %s64 = sphi 0, %s48
      %s68 = sphi 0, %s68
      %s70 = sphi 0, %s68
      %s71 = sphi 0, %s70
      %s85 = sphi 0, %s71
      %s89 = sphi 0, %s89
      %s91 = sphi 0, %s89
      %s92 = sphi 0, %s91
      %s106 = sphi 0, %s92
      %s110 = sphi 0, %s110
      %s112 = sphi 0, %s110
      %s113 = sphi 0, %s112
      %s127 = sphi 0, %s113
      %s131 = sphi 0, %s131
      %s133 = sphi 0, %s131
      %s134 = sphi 0, %s133
      %s148 = sphi 0, %s134
      %s152 = sphi 0, %s152
      %s154 = sphi 0, %s152
      %s155 = sphi 0, %s154
      %s169 = sphi 0, %s155
      %s173 = sphi 0, %s173
      %s175 = sphi 0, %s173
      %s176 = sphi 0, %s175
      %s190 = sphi 0, %s176
      %s198 = sphi 0, %s200
      %s201 = sphi 0, %s198
      %s202 = sphi 0, %s201
      %s218 = sphi 0, %s202
    $region4: #{tpu_custom_call.1} parent=1 // loop_header_branch
      %21 = sbr.rel (%p19) target = $region8
    $region5: #{tpu_custom_call.1} parent=1 // loop_body
      %s23 = ssub.s32 %s18, 1
      %s24 = ssub.s32 %s18, 2
      %s31 = sadd.s32 1, %s26
      %p32 = scmp.ge.s32.totalorder %s31, 1
      %s33 = scalar_select %p32, 0, %s31
      %s34 = sadd.s32 1, %s25
      %s35 = scalar_select %p32, %s34, %s25
      %p36 = scmp.ge.s32.totalorder %s35, 2
      %s37 = scalar_select %p36, 0, %s35
      %s38 = ssub.s32 1, %s25
      %s39 = smul.u32 %s26, %s38
      %s40 = ssub.s32 1, %s37
      %s41 = smul.u32 %s33, %s40
      %s42 = ssub.s32 %s39, %s41
      %p43 = scmp.eq.s32.totalorder %s42, 0
      %s45 = sadd.s32 %s44, 1
      %s46 = scalar_select %p43, %s44, %s45
      %p49 = pneg %p43
      %p50 = scmp.eq.s32.totalorder %s18, 1
      %p51 = por %p49, %p50
      %p52 = scmp.ne.s32.totalorder %s44, %s47
      %p53 = scmp.eq.s32.totalorder %s18, 0
      %p54 = por %p52, %p53
      %p55 = scmp.ne.s32.totalorder %s44, %s47
      %p56 = scmp.eq.s32.totalorder %s23, 1
      %p57 = por %p55, %p56
      %p58 = scmp.ne.s32.totalorder %s47, %s48
      %p59 = scmp.eq.s32.totalorder %s23, 0
      %p60 = por %p58, %p59
      %p61 = scmp.ne.s32.totalorder %s47, %s48
      %p62 = scmp.eq.s32.totalorder %s24, 1
      %p63 = por %p61, %p62
      %p65 = scmp.ne.s32.totalorder %s48, %s64
      %p66 = scmp.eq.s32.totalorder %s24, 0
      %p67 = por %p65, %p66
      %s69 = sadd.s32 %s68, 1
      %p72 = scmp.eq.s32.totalorder %s18, 1
      %p73 = scmp.ne.s32.totalorder %s68, %s70
      %p74 = scmp.eq.s32.totalorder %s18, 0
      %p75 = por %p73, %p74
      %p76 = scmp.ne.s32.totalorder %s68, %s70
      %p77 = scmp.eq.s32.totalorder %s23, 1
      %p78 = por %p76, %p77
      %p79 = scmp.ne.s32.totalorder %s70, %s71
      %p80 = scmp.eq.s32.totalorder %s23, 0
      %p81 = por %p79, %p80
      %p82 = scmp.ne.s32.totalorder %s70, %s71
      %p83 = scmp.eq.s32.totalorder %s24, 1
      %p84 = por %p82, %p83
      %p86 = scmp.ne.s32.totalorder %s71, %s85
      %p87 = scmp.eq.s32.totalorder %s24, 0
      %p88 = por %p86, %p87
      %s90 = sadd.s32 %s89, 1
      %p93 = scmp.eq.s32.totalorder %s18, 1
      %p94 = scmp.ne.s32.totalorder %s89, %s91
      %p95 = scmp.eq.s32.totalorder %s18, 0
      %p96 = por %p94, %p95
      %p97 = scmp.ne.s32.totalorder %s89, %s91
      %p98 = scmp.eq.s32.totalorder %s23, 1
      %p99 = por %p97, %p98
      %p100 = scmp.ne.s32.totalorder %s91, %s92
      %p101 = scmp.eq.s32.totalorder %s23, 0
      %p102 = por %p100, %p101
      %p103 = scmp.ne.s32.totalorder %s91, %s92
      %p104 = scmp.eq.s32.totalorder %s24, 1
      %p105 = por %p103, %p104
      %p107 = scmp.ne.s32.totalorder %s92, %s106
      %p108 = scmp.eq.s32.totalorder %s24, 0
      %p109 = por %p107, %p108
      %s111 = sadd.s32 %s110, 1
      %p114 = scmp.eq.s32.totalorder %s18, 1
      %p115 = scmp.ne.s32.totalorder %s110, %s112
      %p116 = scmp.eq.s32.totalorder %s18, 0
      %p117 = por %p115, %p116
      %p118 = scmp.ne.s32.totalorder %s110, %s112
      %p119 = scmp.eq.s32.totalorder %s23, 1
      %p120 = por %p118, %p119
      %p121 = scmp.ne.s32.totalorder %s112, %s113
      %p122 = scmp.eq.s32.totalorder %s23, 0
      %p123 = por %p121, %p122
      %p124 = scmp.ne.s32.totalorder %s112, %s113
      %p125 = scmp.eq.s32.totalorder %s24, 1
      %p126 = por %p124, %p125
      %p128 = scmp.ne.s32.totalorder %s113, %s127
      %p129 = scmp.eq.s32.totalorder %s24, 0
      %p130 = por %p128, %p129
      %s132 = sadd.s32 %s131, 1
      %p135 = scmp.eq.s32.totalorder %s18, 1
      %p136 = scmp.ne.s32.totalorder %s131, %s133
      %p137 = scmp.eq.s32.totalorder %s18, 0
      %p138 = por %p136, %p137
      %p139 = scmp.ne.s32.totalorder %s131, %s133
      %p140 = scmp.eq.s32.totalorder %s23, 1
      %p141 = por %p139, %p140
      %p142 = scmp.ne.s32.totalorder %s133, %s134
      %p143 = scmp.eq.s32.totalorder %s23, 0
      %p144 = por %p142, %p143
      %p145 = scmp.ne.s32.totalorder %s133, %s134
      %p146 = scmp.eq.s32.totalorder %s24, 1
      %p147 = por %p145, %p146
      %p149 = scmp.ne.s32.totalorder %s134, %s148
      %p150 = scmp.eq.s32.totalorder %s24, 0
      %p151 = por %p149, %p150
      %s153 = sadd.s32 %s152, 1
      %p156 = scmp.eq.s32.totalorder %s18, 1
      %p157 = scmp.ne.s32.totalorder %s152, %s154
      %p158 = scmp.eq.s32.totalorder %s18, 0
      %p159 = por %p157, %p158
      %p160 = scmp.ne.s32.totalorder %s152, %s154
      %p161 = scmp.eq.s32.totalorder %s23, 1
      %p162 = por %p160, %p161
      %p163 = scmp.ne.s32.totalorder %s154, %s155
      %p164 = scmp.eq.s32.totalorder %s23, 0
      %p165 = por %p163, %p164
      %p166 = scmp.ne.s32.totalorder %s154, %s155
      %p167 = scmp.eq.s32.totalorder %s24, 1
      %p168 = por %p166, %p167
      %p170 = scmp.ne.s32.totalorder %s155, %s169
      %p171 = scmp.eq.s32.totalorder %s24, 0
      %p172 = por %p170, %p171
      %s174 = sadd.s32 %s173, 1
      %p177 = scmp.eq.s32.totalorder %s18, 1
      %p178 = scmp.ne.s32.totalorder %s173, %s175
      %p179 = scmp.eq.s32.totalorder %s18, 0
      %p180 = por %p178, %p179
      %p181 = scmp.ne.s32.totalorder %s173, %s175
      %p182 = scmp.eq.s32.totalorder %s23, 1
      %p183 = por %p181, %p182
      %p184 = scmp.ne.s32.totalorder %s175, %s176
      %p185 = scmp.eq.s32.totalorder %s23, 0
      %p186 = por %p184, %p185
      %p187 = scmp.ne.s32.totalorder %s175, %s176
      %p188 = scmp.eq.s32.totalorder %s24, 1
      %p189 = por %p187, %p188
      %p191 = scmp.ne.s32.totalorder %s176, %s190
      %p192 = scmp.eq.s32.totalorder %s24, 0
      %p193 = por %p191, %p192
      %s194 = smul.u32 %s26, %s25
      %s195 = smul.u32 %s33, %s37
      %s196 = ssub.s32 %s194, %s195
      %p197 = scmp.eq.s32.totalorder %s196, 0
      %s199 = sadd.s32 %s198, 1
      %s200 = scalar_select %p197, %s198, %s199
      %p203 = pneg %p197
      %p204 = scmp.eq.s32.totalorder %s18, 1
      %p205 = por %p203, %p204
      %p206 = scmp.ne.s32.totalorder %s198, %s201
      %p207 = scmp.eq.s32.totalorder %s18, 0
      %p208 = por %p206, %p207
      %p209 = scmp.ne.s32.totalorder %s198, %s201
      %p210 = scmp.eq.s32.totalorder %s23, 1
      %p211 = por %p209, %p210
      %p212 = scmp.ne.s32.totalorder %s201, %s202
      %p213 = scmp.eq.s32.totalorder %s23, 0
      %p214 = por %p212, %p213
      %p215 = scmp.ne.s32.totalorder %s201, %s202
      %p216 = scmp.eq.s32.totalorder %s24, 1
      %p217 = por %p215, %p216
      %p219 = scmp.ne.s32.totalorder %s202, %s218
      %p220 = scmp.eq.s32.totalorder %s24, 0
      %p221 = por %p219, %p220
      %p222 = scmp.le.s32.totalorder 1, %s18
      %p223 = scmp.lt.s32.totalorder %s18, 3
      %p224 = pnand %p222, %p223
      %p225 = pneg %p224
      // Predicated region
      $region9: #{tpu_custom_call.1} parent=5 // pred_check
        _
      $region10: #{tpu_custom_call.1} parent=5 // pred_check_branch
        %227 = sbr.rel (%p224) target = $region12
      $region11: #{tpu_custom_call.1} parent=5 // pred_region
        %s228 = ssub.s32 %s18, 1
        // Predicated region
        $region13: #{tpu_custom_call.1} parent=11 // pred_check
          %p229 = pneg %p81
        $region14: #{tpu_custom_call.1} parent=11 // pred_check_branch
          %231 = sbr.rel (%p229) target = $region16
        $region15: #{tpu_custom_call.1} parent=11 // pred_region
          _
        $region16: #{tpu_custom_call.1} parent=11 // pred_fallthru
          _
        // Predicated region
        $region17: #{tpu_custom_call.1} parent=11 // pred_check
          %p232 = pneg %p102
        $region18: #{tpu_custom_call.1} parent=11 // pred_check_branch
          %234 = sbr.rel (%p232) target = $region20
        $region19: #{tpu_custom_call.1} parent=11 // pred_region
          _
        $region20: #{tpu_custom_call.1} parent=11 // pred_fallthru
          _
        // Predicated region
        $region21: #{tpu_custom_call.1} parent=11 // pred_check
          %p235 = pneg %p123
        $region22: #{tpu_custom_call.1} parent=11 // pred_check_branch
          %237 = sbr.rel (%p235) target = $region24
        $region23: #{tpu_custom_call.1} parent=11 // pred_region
          %239 = vsyncadd [#allocation6], 0
          %s240 = sshll.u32 %s3, 4
          %s241 = int_to_ptr.hbm [resolvable:$true] %s240
          %s242 = sshll.u32 [#allocation5], 4
          %s243 = int_to_ptr.vmem [resolvable:$true] %s242
          %248 = dma.hbm_to_vmem [thread:$0]  %s241, 256, %s243, [#allocation6], 64, 64, 4
        $region24: #{tpu_custom_call.1} parent=11 // pred_fallthru
          _
        // Predicated region
        $region25: #{tpu_custom_call.1} parent=11 // pred_check
          %p249 = pneg %p144
        $region26: #{tpu_custom_call.1} parent=11 // pred_check_branch
          %251 = sbr.rel (%p249) target = $region28
        $region27: #{tpu_custom_call.1} parent=11 // pred_region
          %253 = vsyncadd [#allocation9], 0
          %s254 = sshll.u32 %s4, 4
          %s255 = int_to_ptr.hbm [resolvable:$true] %s254
          %s256 = sshll.u32 [#allocation8], 4
          %s257 = int_to_ptr.vmem [resolvable:$true] %s256
          %262 = dma.hbm_to_vmem [thread:$0]  %s255, 256, %s257, [#allocation9], 64, 64, 4
        $region28: #{tpu_custom_call.1} parent=11 // pred_fallthru
          _
        // Predicated region
        $region29: #{tpu_custom_call.1} parent=11 // pred_check
          %p263 = pneg %p165
        $region30: #{tpu_custom_call.1} parent=11 // pred_check_branch
          %265 = sbr.rel (%p263) target = $region32
        $region31: #{tpu_custom_call.1} parent=11 // pred_region
          _
        $region32: #{tpu_custom_call.1} parent=11 // pred_fallthru
          _
        // Predicated region
        $region33: #{tpu_custom_call.1} parent=11 // pred_check
          %p266 = pneg %p186
        $region34: #{tpu_custom_call.1} parent=11 // pred_check_branch
          %268 = sbr.rel (%p266) target = $region36
        $region35: #{tpu_custom_call.1} parent=11 // pred_region
          _
        $region36: #{tpu_custom_call.1} parent=11 // pred_fallthru
          _
      $region12: #{tpu_custom_call.1} parent=5 // pred_fallthru
        _
      %p269 = scmp.lt.s32.totalorder %s18, 2
      // Predicated region
      $region37: #{tpu_custom_call.1} parent=5 // pred_check
        %p270 = pneg %p269
      $region38: #{tpu_custom_call.1} parent=5 // pred_check_branch
        %272 = sbr.rel (%p270) target = $region40
      $region39: #{tpu_custom_call.1} parent=5 // pred_region
        // Predicated region
        $region41: #{tpu_custom_call.1} parent=39 // pred_check
          %p273 = pneg %p54
        $region42: #{tpu_custom_call.1} parent=39 // pred_check_branch
          %275 = sbr.rel (%p273) target = $region44
        $region43: #{tpu_custom_call.1} parent=39 // pred_region
          %s276 = ssub.s32 1, %s25
          %s277 = smul.u32 %s26, %s276
          %s278 = smul.u32 2, %s277
          %p279 = scmp.lt.s32.totalorder %s278, 1
          %s280 = scalar_select %p279, %s278, 1
          %s281 = smul.addr %s280, 4
          %s282 = scalar_lea.vmem %s0, %s281
          %s283 = ssub.s32 1, %s25
          %s284 = smul.u32 %s26, %s283
          %s285 = smul.u32 2, %s284
        $region44: #{tpu_custom_call.1} parent=39 // pred_fallthru
          _
      $region40: #{tpu_custom_call.1} parent=5 // pred_fallthru
        _
      %p286 = scmp.le.s32.totalorder 1, %s18
      %p287 = scmp.lt.s32.totalorder %s18, 3
      %p288 = pnand %p286, %p287
      %p289 = pneg %p288
      // Predicated region
      $region45: #{tpu_custom_call.1} parent=5 // pred_check
        _
      $region46: #{tpu_custom_call.1} parent=5 // pred_check_branch
        %291 = sbr.rel (%p288) target = $region48
      $region47: #{tpu_custom_call.1} parent=5 // pred_region
        %s292 = ssub.s32 %s18, 1
        // Predicated region
        $region49: #{tpu_custom_call.1} parent=47 // pred_check
          %p293 = pneg %p123
        $region50: #{tpu_custom_call.1} parent=47 // pred_check_branch
          %295 = sbr.rel (%p293) target = $region52
        $region51: #{tpu_custom_call.1} parent=47 // pred_region
          %297 = dma.done [#allocation6], 256
        $region52: #{tpu_custom_call.1} parent=47 // pred_fallthru
          _
        // Predicated region
        $region53: #{tpu_custom_call.1} parent=47 // pred_check
          %p298 = pneg %p144
        $region54: #{tpu_custom_call.1} parent=47 // pred_check_branch
          %300 = sbr.rel (%p298) target = $region56
        $region55: #{tpu_custom_call.1} parent=47 // pred_region
          %302 = dma.done [#allocation9], 256
        $region56: #{tpu_custom_call.1} parent=47 // pred_fallthru
          _
        %s303 = ssub.s32 1, %s27
        %s304 = smul.u32 %s28, %s303
        %s305 = smul.u32 2, %s304
        %p306 = scmp.lt.s32.totalorder %s305, 1
        %s307 = scalar_select %p306, %s305, 1
        %s308 = smul.addr %s307, 4
        %s309 = scalar_lea.vmem %s0, %s308
        %p310 = pneg %p60
        %p311 = pneg %p57
        %p312 = pneg %p81
        %p313 = pneg %p78
        %p314 = pneg %p102
        %p315 = pneg %p99
        %p316 = pneg %p123
        %p317 = pneg %p120
        %p318 = pneg %p144
        %p319 = pneg %p141
        %p320 = pneg %p165
        %p321 = pneg %p162
        %p322 = pneg %p186
        %p323 = pneg %p183
        %p324 = pneg %p214
        %p325 = pneg %p211
        %s326 = sand.u32 %s201, 1
        %s327 = scalar_lea.sflag [#allocation7], %s326
        %s328 = sand.u32 %s201, 1
        %s329 = smul.addr %s328, 16
        %s330 = scalar_lea.vmem [#allocation10], %s329
        %s331 = ssub.s32 1, %s27
        %s332 = smul.u32 %s28, %s331
        %s333 = smul.u32 2, %s332
        %p334 = scmp.lt.s32.totalorder %s333, 1
        %s335 = scalar_select %p334, %s333, 1
        %s336 = smul.addr %s335, 4
        %s337 = scalar_lea.vmem %s0, %s336
        %s338 = ssub.s32 1, %s27
        %s339 = smul.u32 %s28, %s338
        %s340 = smul.u32 2, %s339
        %s341 = smul.u32 %s28, %s27
        %s342 = smul.u32 2, %s341
        %p344 = scmp.eq.s32.totalorder %s27, 0
        %p345 = scmp.eq.s32.totalorder %s28, 0
        %p346 = pnand %p344, %p345
        %p347 = pneg %p346
        // Predicated region
        $region57: #{tpu_custom_call.1} parent=47 // pred_check
          _
        $region58: #{tpu_custom_call.1} parent=47 // pred_check_branch
          %349 = sbr.rel (%p346) target = $region60
        $region59: #{tpu_custom_call.1} parent=47 // pred_region
          %vm350 = vcmask 261120
          %351 = vst.msk [vmem:[#allocation2] sm:$0xff] %vm350, 0.0
          %352 = vst.msk [vmem:[#allocation2 + $0x8] sm:$0xff] %vm350, 0.0
        $region60: #{tpu_custom_call.1} parent=47 // pred_fallthru
          _
        // Predicated region
        $region61: #{tpu_custom_call.1} parent=47 // pred_check
          %p353 = pneg %p344
        $region62: #{tpu_custom_call.1} parent=47 // pred_check_branch
          %355 = sbr.rel (%p353) target = $region64
        $region63: #{tpu_custom_call.1} parent=47 // pred_region
          %v356 = vld [vmem:[%s337] sm:$0xf]
          %v357 = vld [vmem:[%s337 + $0x4] sm:$0xf]
          %v358 = vld [vmem:[%s337 + $0x8] sm:$0xf]
          %v359 = vld [vmem:[%s337 + $0xc] sm:$0xf]
          %v360 = vld [vmem:[%s1] sm:$0xf]
          %v361 = vld [vmem:[%s1 + $0x4] sm:$0xf]
          %v362 = vld [vmem:[%s1 + $0x8] sm:$0xf]
          %v363 = vld [vmem:[%s1 + $0xc] sm:$0xf]
          %v364 = vld [vmem:[%s2] sm:$0x1]
          %v366 = vperm.slane %v364, 0
          %v372 = vunpack.c.l.b16 %v356
          %v373 = vunpack.c.l.b16 %v357
          %v374 = vunpack.c.l.b16 %v358
          %v375 = vunpack.c.l.b16 %v359
          %v376 = vpack.c.b16 %v373, %v372
          %v377 = vpack.c.b16 %v375, %v374
          %v382 = vunpack.c.l.b16 %v360
          %v383 = vunpack.c.l.b16 %v361
          %v384 = vunpack.c.l.b16 %v362
          %v385 = vunpack.c.l.b16 %v363
          %v386 = vpack.c.b16 %v383, %v382
          %v387 = vpack.c.b16 %v385, %v384
          %vm390 = vcmask 261120
          %v392 = vsel %vm390, %v376, 0
          %v395 = vsel %vm390, %v377, 0
          %397 = vmatpush.bf16.msra.mxu0 0
          %398 = vmatpush.bf16.msra.mxu0 0
          %399 = vmatpush.bf16.msra.mxu0 0
          %400 = vmatpush.bf16.msra.mxu0 0
          %401 = vmatpush.bf16.msra.mxu0 0
          %402 = vmatpush.bf16.msra.mxu0 0
          %403 = vmatpush.bf16.msra.mxu0 %v387
          %404 = vmatpush.bf16.msra.mxu0 %v386
          %405 = vmatmul.bf16.gmra.mxu0 %v392
          %v406 = vpop.f32.mrf.mxu0
          %v407 = vadd.f32 %v366, %v406
          %v408 = vpop.f32.mrf.mxu0
          %v409 = vadd.f32 %v366, %v408
          %410 = vmatmul.bf16.gmra.mxu0 %v395
          %v411 = vpop.f32.mrf.mxu0
          %v412 = vadd.f32 %v366, %v411
          %v413 = vpop.f32.mrf.mxu0
          %v414 = vadd.f32 %v366, %v413
          %415 = vdwg.mxu0
          %vm416 = vcmask 64512
          %v417 = vsel %vm416, %v407, -inf
          %418 = vmax.xlane.f32.xlu0 %v417
          %v419 = vpop.xlane.xlu0 %418
          %v420 = vsel %vm416, %v409, -inf
          %421 = vmax.xlane.f32.xlu0 %v420
          %v422 = vpop.xlane.xlu0 %421
          %v423 = vsel %vm416, %v412, -inf
          %424 = vmax.xlane.f32.xlu0 %v423
          %v425 = vpop.xlane.xlu0 %424
          %v426 = vsel %vm416, %v414, -inf
          %427 = vmax.xlane.f32.xlu0 %v426
          %v428 = vpop.xlane.xlu0 %427
          %v429 = vsub.f32 %v407, %v419
          %v430 = vsub.f32 %v409, %v422
          %v431 = vsub.f32 %v412, %v425
          %v432 = vsub.f32 %v414, %v428
          %v433 = vmul.f32 %v429, 1.442695
          %v434 = vpow.pop %v433
          %v435 = vmul.f32 %v430, 1.442695
          %v436 = vpow.pop %v435
          %v437 = vmul.f32 %v431, 1.442695
          %v438 = vpow.pop %v437
          %v439 = vmul.f32 %v432, 1.442695
          %v440 = vpow.pop %v439
          %v441 = vsel %vm416, %v434, 0.0
          %442 = vadd.xlane.f32.xlu0 %v441
          %v443 = vpop.xlane.xlu0 %442
          %v444 = vsel %vm416, %v436, 0.0
          %445 = vadd.xlane.f32.xlu0 %v444
          %v446 = vpop.xlane.xlu0 %445
          %v447 = vsel %vm416, %v438, 0.0
          %448 = vadd.xlane.f32.xlu0 %v447
          %v449 = vpop.xlane.xlu0 %448
          %v450 = vsel %vm416, %v440, 0.0
          %451 = vadd.xlane.f32.xlu0 %v450
          %v452 = vpop.xlane.xlu0 %451
          %v453 = vrcp.pop %v443
          %v454 = vmul.f32 %v443, %v453
          %v455 = vsub.f32 1.0, %v454
          %v456 = vmul.f32 %v453, %v455
          %v457 = vadd.f32 %v453, %v456
          %vm458 = vweird.f32 %v443
          %vm459 = vweird.f32 %v453
          %vm460 = vmor %vm458, %vm459
          %v461 = vsel %vm460, %v453, %v457
          %v462 = vand.u32 2147483647, %v443
          %vm463 = vcmp.eq.f32.partialorder %v462, 8.507059e+37
          %v464 = vand.u32 %v443, 2147483648
          %v465 = vor.u32 1.1754944e-38, %v464
          %v466 = vsel %vm463, %v465, %v461
          %v467 = vrcp.pop %v446
          %v468 = vmul.f32 %v446, %v467
          %v469 = vsub.f32 1.0, %v468
          %v470 = vmul.f32 %v467, %v469
          %v471 = vadd.f32 %v467, %v470
          %vm472 = vweird.f32 %v446
          %vm473 = vweird.f32 %v467
          %vm474 = vmor %vm472, %vm473
          %v475 = vsel %vm474, %v467, %v471
          %v476 = vand.u32 2147483647, %v446
          %vm477 = vcmp.eq.f32.partialorder %v476, 8.507059e+37
          %v478 = vand.u32 %v446, 2147483648
          %v479 = vor.u32 1.1754944e-38, %v478
          %v480 = vsel %vm477, %v479, %v475
          %v481 = vrcp.pop %v449
          %v482 = vmul.f32 %v449, %v481
          %v483 = vsub.f32 1.0, %v482
          %v484 = vmul.f32 %v481, %v483
          %v485 = vadd.f32 %v481, %v484
          %vm486 = vweird.f32 %v449
          %vm487 = vweird.f32 %v481
          %vm488 = vmor %vm486, %vm487
          %v489 = vsel %vm488, %v481, %v485
          %v490 = vand.u32 2147483647, %v449
          %vm491 = vcmp.eq.f32.partialorder %v490, 8.507059e+37
          %v492 = vand.u32 %v449, 2147483648
          %v493 = vor.u32 1.1754944e-38, %v492
          %v494 = vsel %vm491, %v493, %v489
          %v495 = vrcp.pop %v452
          %v496 = vmul.f32 %v452, %v495
          %v497 = vsub.f32 1.0, %v496
          %v498 = vmul.f32 %v495, %v497
          %v499 = vadd.f32 %v495, %v498
          %vm500 = vweird.f32 %v452
          %vm501 = vweird.f32 %v495
          %vm502 = vmor %vm500, %vm501
          %v503 = vsel %vm502, %v495, %v499
          %v504 = vand.u32 2147483647, %v452
          %vm505 = vcmp.eq.f32.partialorder %v504, 8.507059e+37
          %v506 = vand.u32 %v452, 2147483648
          %v507 = vor.u32 1.1754944e-38, %v506
          %v508 = vsel %vm505, %v507, %v503
          %v509 = vmul.f32 %v434, %v466
          %v510 = vmul.f32 %v436, %v480
          %v511 = vmul.f32 %v438, %v494
          %v512 = vmul.f32 %v440, %v508
          %v513 = vpack.c.bf16 %v509, %v509
          %v514 = vpack.c.bf16 %v510, %v510
          %v515 = vpack.c.bf16 %v511, %v511
          %v516 = vpack.c.bf16 %v512, %v512
          %s517 = smul.u32 %s28, 4
          %s518 = smul.addr %s517, 4
          %s519 = scalar_lea.vmem [#allocation4], %s518
          %vm520 = vcmask 60416
          %521 = vst.msk [vmem:[%s519] sm:$0xf] %vm520, %v513
          %522 = vst.msk [vmem:[%s519 + $0x4] sm:$0xf] %vm520, %v514
          %523 = vst.msk [vmem:[%s519 + $0x8] sm:$0xf] %vm520, %v515
          %524 = vst.msk [vmem:[%s519 + $0xc] sm:$0xf] %vm520, %v516
          %v525 = vld [vmem:[#allocation2] sm:$0xff]
          %v526 = vld [vmem:[#allocation2 + $0x8] sm:$0xff]
          %v527 = vld [vmem:[%s337] sm:$0xf]
          %v528 = vld [vmem:[%s337 + $0x4] sm:$0xf]
          %v529 = vld [vmem:[%s337 + $0x8] sm:$0xf]
          %v530 = vld [vmem:[%s337 + $0xc] sm:$0xf]
          %v533 = vunpack.c.l.b16 %v513
          %v534 = vunpack.c.l.b16 %v514
          %v535 = vpack.c.b16 %v534, %v533
          %537 = vxpose.xlu0.c.b16.start [1/8] %v535, 128
          %538 = vxpose.xlu0.c.b16.cont [2/8] 0, 128
          %539 = vxpose.xlu0.c.b16.cont [3/8] 0, 128
          %540 = vxpose.xlu0.c.b16.cont [4/8] 0, 128
          %541 = vxpose.xlu0.c.b16.cont [5/8] 0, 128
          %542 = vxpose.xlu0.c.b16.cont [6/8] 0, 128
          %543 = vxpose.xlu0.c.b16.cont [7/8] 0, 128
          %544 = vxpose.xlu0.c.b16.end [8/8] 0, 128
          %v545 = vpop.trf.xlu0
          %v546 = vpop.trf.xlu0
          %v547 = vpop.trf.xlu0
          %v548 = vpop.trf.xlu0
          %v549 = vpop.trf.xlu0
          %v550 = vpop.trf.xlu0
          %v551 = vpop.trf.xlu0
          %v552 = vpop.trf.xlu0
          %v555 = vunpack.c.l.b16 %v527
          %v556 = vunpack.c.l.b16 %v528
          %v557 = vpack.c.b16 %v556, %v555
          %vm559 = vcmask 130048
          %v561 = vsel %vm559, %v545, 0
          %563 = vmatpush.bf16.msra.mxu0 0
          %564 = vmatpush.bf16.msra.mxu0 0
          %565 = vmatpush.bf16.msra.mxu0 0
          %566 = vmatpush.bf16.msra.mxu0 0
          %567 = vmatpush.bf16.msra.mxu0 0
          %568 = vmatpush.bf16.msra.mxu0 0
          %569 = vmatpush.bf16.msra.mxu0 0
          %570 = vmatpush.bf16.msra.mxu0 %v557
          %571 = vmatmul.bf16.gmra.mxu0 %v561
          %v572 = vpop.f32.mrf.mxu0
          %v573 = vadd.f32 0.0, %v572
          %v574 = vpop.f32.mrf.mxu0
          %575 = vdwg.mxu0
          %v578 = vunpack.c.l.b16 %v515
          %v579 = vunpack.c.l.b16 %v516
          %v580 = vpack.c.b16 %v579, %v578
          %582 = vxpose.xlu0.c.b16.start [1/8] %v580, 128
          %583 = vxpose.xlu0.c.b16.cont [2/8] 0, 128
          %584 = vxpose.xlu0.c.b16.cont [3/8] 0, 128
          %585 = vxpose.xlu0.c.b16.cont [4/8] 0, 128
          %586 = vxpose.xlu0.c.b16.cont [5/8] 0, 128
          %587 = vxpose.xlu0.c.b16.cont [6/8] 0, 128
          %588 = vxpose.xlu0.c.b16.cont [7/8] 0, 128
          %589 = vxpose.xlu0.c.b16.end [8/8] 0, 128
          %v590 = vpop.trf.xlu0
          %v591 = vpop.trf.xlu0
          %v592 = vpop.trf.xlu0
          %v593 = vpop.trf.xlu0
          %v594 = vpop.trf.xlu0
          %v595 = vpop.trf.xlu0
          %v596 = vpop.trf.xlu0
          %v597 = vpop.trf.xlu0
          %v600 = vunpack.c.l.b16 %v529
          %v601 = vunpack.c.l.b16 %v530
          %v602 = vpack.c.b16 %v601, %v600
          %v605 = vsel %vm559, %v590, 0
          %607 = vmatpush.bf16.msra.mxu0 0
          %608 = vmatpush.bf16.msra.mxu0 0
          %609 = vmatpush.bf16.msra.mxu0 0
          %610 = vmatpush.bf16.msra.mxu0 0
          %611 = vmatpush.bf16.msra.mxu0 0
          %612 = vmatpush.bf16.msra.mxu0 0
          %613 = vmatpush.bf16.msra.mxu0 0
          %614 = vmatpush.bf16.msra.mxu0 %v602
          %615 = vmatmul.bf16.gmra.mxu0 %v605
          %v616 = vpop.f32.mrf.mxu0
          %v617 = vadd.f32 0.0, %v616
          %v618 = vpop.f32.mrf.mxu0
          %619 = vdwg.mxu0
          %v620 = vadd.f32 %v525, %v573
          %v621 = vadd.f32 %v526, %v617
          %622 = vst.msk [vmem:[#allocation2] sm:$0xff] %vm390, %v620
          %623 = vst.msk [vmem:[#allocation2 + $0x8] sm:$0xff] %vm390, %v621
        $region64: #{tpu_custom_call.1} parent=47 // pred_fallthru
          _
        // Predicated region
        $region65: #{tpu_custom_call.1} parent=47 // pred_check
          _
        $region66: #{tpu_custom_call.1} parent=47 // pred_check_branch
          %625 = sbr.rel (%p346) target = $region68
        $region67: #{tpu_custom_call.1} parent=47 // pred_region
          %v626 = vld [vmem:[#allocation2] sm:$0xff]
          %v627 = vld [vmem:[#allocation2 + $0x8] sm:$0xff]
          %vm628 = vcmask 261120
          %v629 = vsel %vm628, %v626, 0.0
          %630 = vadd.xlane.f32.xlu0 %v629
          %v631 = vpop.xlane.xlu0 %630
          %v632 = vsel %vm628, %v627, 0.0
          %633 = vadd.xlane.f32.xlu0 %v632
          %v634 = vpop.xlane.xlu0 %633
          %v635 = vadd.f32 %v631, %v634
          %v636 = vrcp.pop 64.0
          %v637 = vmul.f32 64.0, %v636
          %v638 = vsub.f32 1.0, %v637
          %v639 = vmul.f32 %v636, %v638
          %v640 = vadd.f32 %v636, %v639
          %vm641 = vweird.f32 %v636
          %v642 = vsel %vm641, %v636, %v640
          %v643 = vmul.f32 %v635, %v642
          %v644 = vsub.f32 %v626, %v643
          %v645 = vsub.f32 %v627, %v643
          %v646 = vmul.f32 %v644, %v644
          %v647 = vmul.f32 %v645, %v645
          %v648 = vsel %vm628, %v646, 0.0
          %649 = vadd.xlane.f32.xlu0 %v648
          %v650 = vpop.xlane.xlu0 %649
          %v651 = vsel %vm628, %v647, 0.0
          %652 = vadd.xlane.f32.xlu0 %v651
          %v653 = vpop.xlane.xlu0 %652
          %v654 = vadd.f32 %v650, %v653
          %v655 = vmul.f32 %v654, %v642
          %v656 = vadd.f32 %v655, 1e-05
          %v657 = vrsqrt.pop %v656
          %v658 = vmul.f32 %v657, %v656
          %v659 = vmul.f32 %v658, %v657
          %v660 = vmul.f32 0.5, %v659
          %v661 = vsub.f32 1.5, %v660
          %v662 = vmul.f32 %v657, %v661
          %vm663 = vweird.f32 %v656
          %vm664 = vweird.f32 %v657
          %vm665 = vmor %vm663, %vm664
          %v666 = vsel %vm665, %v657, %v662
          %v667 = vmul.f32 %v644, %v666
          %v668 = vmul.f32 %v645, %v666
          %v669 = vpack.c.bf16 %v668, %v667
          %v670 = vld [vmem:[#allocation5] sm:$0xf]
          %v671 = vld [vmem:[#allocation5 + $0x4] sm:$0xf]
          %v672 = vld [vmem:[#allocation5 + $0x8] sm:$0xf]
          %v673 = vld [vmem:[#allocation5 + $0xc] sm:$0xf]
          %v674 = vld [vmem:[%s5] sm:$0x1]
          %v676 = vperm.slane %v674, 0
          %v682 = vunpack.c.l.b16 %v670
          %v683 = vunpack.c.l.b16 %v671
          %v684 = vunpack.c.l.b16 %v672
          %v685 = vunpack.c.l.b16 %v673
          %v686 = vpack.c.b16 %v683, %v682
          %v687 = vpack.c.b16 %v685, %v684
          %v691 = vsel %vm628, %v669, 0
          %693 = vmatpush.bf16.msra.mxu0 0
          %694 = vmatpush.bf16.msra.mxu0 0
          %695 = vmatpush.bf16.msra.mxu0 0
          %696 = vmatpush.bf16.msra.mxu0 0
          %697 = vmatpush.bf16.msra.mxu0 0
          %698 = vmatpush.bf16.msra.mxu0 0
          %699 = vmatpush.bf16.msra.mxu0 %v687
          %700 = vmatpush.bf16.msra.mxu0 %v686
          %701 = vmatmul.bf16.gmra.mxu0 %v691
          %v702 = vpop.f32.mrf.mxu0
          %v703 = vadd.f32 %v676, %v702
          %v704 = vpop.f32.mrf.mxu0
          %v705 = vadd.f32 %v676, %v704
          %706 = vdwg.mxu0
          %v707 = vmul.f32 %v703, 0.2
          %v708 = vmul.f32 %v705, 0.2
          %v709 = vmax.f32 %v703, %v707
          %v710 = vmax.f32 %v705, %v708
          %v711 = vpack.c.bf16 %v710, %v709
          %v712 = vld [vmem:[#allocation8] sm:$0xf]
          %v713 = vld [vmem:[#allocation8 + $0x4] sm:$0xf]
          %v714 = vld [vmem:[#allocation8 + $0x8] sm:$0xf]
          %v715 = vld [vmem:[#allocation8 + $0xc] sm:$0xf]
          %v716 = vld [vmem:[%s6] sm:$0x1]
          %v718 = vperm.slane %v716, 0
          %v724 = vunpack.c.l.b16 %v712
          %v725 = vunpack.c.l.b16 %v713
          %v726 = vunpack.c.l.b16 %v714
          %v727 = vunpack.c.l.b16 %v715
          %v728 = vpack.c.b16 %v725, %v724
          %v729 = vpack.c.b16 %v727, %v726
          %v733 = vsel %vm628, %v711, 0
          %735 = vmatpush.bf16.msra.mxu0 0
          %736 = vmatpush.bf16.msra.mxu0 0
          %737 = vmatpush.bf16.msra.mxu0 0
          %738 = vmatpush.bf16.msra.mxu0 0
          %739 = vmatpush.bf16.msra.mxu0 0
          %740 = vmatpush.bf16.msra.mxu0 0
          %741 = vmatpush.bf16.msra.mxu0 %v729
          %742 = vmatpush.bf16.msra.mxu0 %v728
          %743 = vmatmul.bf16.gmra.mxu0 %v733
          %v744 = vpop.f32.mrf.mxu0
          %v745 = vadd.f32 %v718, %v744
          %v746 = vpop.f32.mrf.mxu0
          %v747 = vadd.f32 %v718, %v746
          %748 = vdwg.mxu0
          %v749 = vmul.f32 %v745, 0.2
          %v750 = vmul.f32 %v747, 0.2
          %v751 = vmax.f32 %v745, %v749
          %v752 = vmax.f32 %v747, %v750
          %v753 = vpack.c.bf16 %v751, %v751
          %v754 = vpack.c.bf16 %v752, %v752
          %vm755 = vcmask 257024
          %756 = vst.msk [vmem:[#allocation3] sm:$0xf] %vm755, %v753
          %757 = vst.msk [vmem:[#allocation3 + $0x4] sm:$0xf] %vm755, %v754
        $region68: #{tpu_custom_call.1} parent=47 // pred_fallthru
          _
        %p758 = scmp.eq.s32.totalorder %s27, 1
        // Predicated region
        $region69: #{tpu_custom_call.1} parent=47 // pred_check
          %p759 = pneg %p758
        $region70: #{tpu_custom_call.1} parent=47 // pred_check_branch
          %761 = sbr.rel (%p759) target = $region72
        $region71: #{tpu_custom_call.1} parent=47 // pred_region
          %s762 = smul.u32 %s28, 4
          %s763 = smul.addr %s762, 4
          %s764 = scalar_lea.vmem [#allocation4], %s763
          %v765 = vld [vmem:[%s764] sm:$0xf]
          %v766 = vld [vmem:[%s764 + $0x4] sm:$0xf]
          %v767 = vld [vmem:[%s764 + $0x8] sm:$0xf]
          %v768 = vld [vmem:[%s764 + $0xc] sm:$0xf]
          %v769 = vld [vmem:[#allocation3] sm:$0xf]
          %v770 = vld [vmem:[#allocation3 + $0x4] sm:$0xf]
          %v773 = vunpack.c.l.b16 %v765
          %v774 = vunpack.c.l.b16 %v766
          %v775 = vpack.c.b16 %v774, %v773
          %vm776 = vcmask 64512
          %v778 = vsel %vm776, %v775, 0
          %vm780 = vcmask 1043456
          %v782 = vsel %vm780, %v769, 0
          %784 = vmatpush.bf16.msra.mxu0 0
          %785 = vmatpush.bf16.msra.mxu0 0
          %786 = vmatpush.bf16.msra.mxu0 0
          %787 = vmatpush.bf16.msra.mxu0 0
          %788 = vmatpush.bf16.msra.mxu0 0
          %789 = vmatpush.bf16.msra.mxu0 0
          %790 = vmatpush.bf16.msra.mxu0 0
          %791 = vmatpush.bf16.msra.mxu0 %v782
          %792 = vmatmul.bf16.gmra.mxu0 %v778
          %v793 = vpop.f32.mrf.mxu0
          %v794 = vadd.f32 0.0, %v793
          %v795 = vpop.f32.mrf.mxu0
          %v796 = vadd.f32 0.0, %v795
          %797 = vdwg.mxu0
          %v800 = vunpack.c.l.b16 %v767
          %v801 = vunpack.c.l.b16 %v768
          %v802 = vpack.c.b16 %v801, %v800
          %v804 = vsel %vm776, %v802, 0
          %v807 = vsel %vm780, %v770, 0
          %809 = vmatpush.bf16.msra.mxu0 0
          %810 = vmatpush.bf16.msra.mxu0 0
          %811 = vmatpush.bf16.msra.mxu0 0
          %812 = vmatpush.bf16.msra.mxu0 0
          %813 = vmatpush.bf16.msra.mxu0 0
          %814 = vmatpush.bf16.msra.mxu0 0
          %815 = vmatpush.bf16.msra.mxu0 0
          %816 = vmatpush.bf16.msra.mxu0 %v807
          %817 = vmatmul.bf16.gmra.mxu0 %v804
          %v818 = vpop.f32.mrf.mxu0
          %v819 = vadd.f32 0.0, %v818
          %v820 = vpop.f32.mrf.mxu0
          %v821 = vadd.f32 0.0, %v820
          %822 = vdwg.mxu0
          %v823 = vpack.c.bf16 %v794, %v794
          %v824 = vpack.c.bf16 %v796, %v796
          %v825 = vpack.c.bf16 %v819, %v819
          %v826 = vpack.c.bf16 %v821, %v821
          %vm827 = vcmask 257024
          %828 = vst.msk [vmem:[%s330] sm:$0xf] %vm827, %v823
          %829 = vst.msk [vmem:[%s330 + $0x4] sm:$0xf] %vm827, %v824
          %830 = vst.msk [vmem:[%s330 + $0x8] sm:$0xf] %vm827, %v825
          %831 = vst.msk [vmem:[%s330 + $0xc] sm:$0xf] %vm827, %v826
        $region72: #{tpu_custom_call.1} parent=47 // pred_fallthru
          _
        %s832 = sand.u32 %s201, 1
        %s833 = scalar_lea.sflag [#allocation7], %s832
        %s834 = sand.u32 %s201, 1
        %s835 = smul.addr %s834, 16
        %s836 = scalar_lea.vmem [#allocation10], %s835
        // Predicated region
        $region73: #{tpu_custom_call.1} parent=47 // pred_check
          %p837 = pneg %p211
        $region74: #{tpu_custom_call.1} parent=47 // pred_check_branch
          %839 = sbr.rel (%p837) target = $region76
        $region75: #{tpu_custom_call.1} parent=47 // pred_region
          %s840 = smul.u32 %s28, %s27
          %s841 = smul.u32 2, %s840
          %843 = vsyncadd %s833, 0
          %s844 = smul.addr %s841, 4
          %s845 = scalar_lea.hbm %s7, %s844
          %s846 = sshll.u32 %s836, 4
          %s847 = int_to_ptr.vmem [resolvable:$true] %s846
          %s848 = sshll.u32 %s845, 4
          %s849 = int_to_ptr.hbm [resolvable:$true] %s848
          %854 = dma.vmem_to_hbm [thread:$0]  %s847, 256, %s849, %s833, 64, 64, 4
        $region76: #{tpu_custom_call.1} parent=47 // pred_fallthru
          _
      $region48: #{tpu_custom_call.1} parent=5 // pred_fallthru
        _
      %p855 = scmp.le.s32.totalorder 2, %s18
      // Predicated region
      $region77: #{tpu_custom_call.1} parent=5 // pred_check
        %p856 = pneg %p855
      $region78: #{tpu_custom_call.1} parent=5 // pred_check_branch
        %858 = sbr.rel (%p856) target = $region80
      $region79: #{tpu_custom_call.1} parent=5 // pred_region
        %s859 = ssub.s32 %s18, 2
        // Predicated region
        $region81: #{tpu_custom_call.1} parent=79 // pred_check
          %p860 = pneg %p217
        $region82: #{tpu_custom_call.1} parent=79 // pred_check_branch
          %862 = sbr.rel (%p860) target = $region84
        $region83: #{tpu_custom_call.1} parent=79 // pred_region
          %s863 = sand.u32 %s202, 1
          %s864 = scalar_lea.sflag [#allocation7], %s863
          %s865 = sand.u32 %s202, 1
          %s866 = smul.addr %s865, 16
          %s867 = scalar_lea.vmem [#allocation10], %s866
          %869 = dma.done %s864, 256
        $region84: #{tpu_custom_call.1} parent=79 // pred_fallthru
          _
      $region80: #{tpu_custom_call.1} parent=5 // pred_fallthru
        _
    $region6: #{tpu_custom_call.1} parent=1 // loop_footer
      %s22 = sadd.s32 1, %s18
    $region7: #{tpu_custom_call.1} parent=1 // loop_footer_branch
      %17 = sbr.rel target = $region3
    $region8: #{tpu_custom_call.1} parent=1 // loop_exit
      _
    %870 = vsyncpa [#allocation6], 1
    %s871 = scalar_lea.sflag [#allocation6], 1
    %872 = vsyncpa %s871, 1
    %873 = vsyncpa [#allocation9], 1
    %874 = vsyncpa [#allocation7], 1
    %s875 = scalar_lea.sflag [#allocation7], 1
    %876 = vsyncpa %s875, 1

</llo_original>
